<compile_context>
chip_gen: v6e
topology: v6e:2x2x1
jax: 0.10.0
libtpu: 0.0.40
codegen_flags: <defaults>
</compile_context>

<pallas_src>
import jax
import jax.numpy as jnp
from jax.experimental import pallas as pl
from jax.experimental.pallas import tpu as pltpu


def _round_up(x: int, m: int) -> int:
    return (x + m - 1) // m * m


def _fused_kernel(x_ref, w_enc_ref, b_enc_ref, w_fc_ref, b_fc_ref, o_ref,
                  h_acc, out_acc):
    """Grid = (M tiles, contexts, K tiles).

    x_ref     : (tm, tk)   activations of context c, rows tile i, K tile k
    w_enc_ref : (tk, Hp)   encoder weight K-slab
    b_enc_ref : (1, Hp)    encoder bias
    w_fc_ref  : (Hp, Np)   fc weight rows belonging to context c
    b_fc_ref  : (1, Np)    fc bias
    o_ref     : (tm, Np)   logits tile (resident across c and k)
    h_acc     : (tm, Hp)   f32 scratch — encoder pre-activation accumulator
    out_acc   : (tm, Np)   f32 scratch — fc accumulator over contexts
    """
    c = pl.program_id(1)
    k = pl.program_id(2)
    nc = pl.num_programs(1)
    nk = pl.num_programs(2)

    @pl.when(jnp.logical_and(c == 0, k == 0))
    def _():
        out_acc[...] = jnp.zeros_like(out_acc)

    @pl.when(k == 0)
    def _():
        h_acc[...] = jnp.zeros_like(h_acc)

    # Encoder matmul, accumulated over the K grid axis.
    h_acc[...] += jnp.dot(x_ref[...], w_enc_ref[...],
                          preferred_element_type=jnp.float32)

    # Finished the contraction for this context: bias + ReLU, then feed the
    # per-context hidden block straight into the fc accumulation (this is the
    # torch.cat(dim=-1) followed by the fc matmul, decomposed per context).
    @pl.when(k == nk - 1)
    def _():
        h = jnp.maximum(h_acc[...] + b_enc_ref[...], 0.0)
        out_acc[...] += jnp.dot(h, w_fc_ref[...],
                                preferred_element_type=jnp.float32)

    # Last context, last K slab: add fc bias and store the logits tile.
    @pl.when(jnp.logical_and(c == nc - 1, k == nk - 1))
    def _():
        o_ref[...] = (out_acc[...] + b_fc_ref[...]).astype(o_ref.dtype)


def context_prediction_fused(x, w_enc_p, b_enc_p, w_fc_p, b_fc_p, *,
                             tk: int, num_classes: int):
    """Fused forward: x (C, M, K) -> logits (M, num_classes)."""
    C, M, K = x.shape
    Kp, Hp = w_enc_p.shape
    _, _, Np = w_fc_p.shape
    assert w_fc_p.shape[0] == C and Kp % tk == 0

    # Row tile with bounded padding (dead rows < tm, never ~2x past a boundary).
    # NOTE: on v7x (2 TensorCores) a grid with >=2 M blocks lets the leading
    # "parallel" axis shard across cores; with tiny batches that is moot.
    tm = _round_up(pl.cdiv(M, pl.cdiv(M, 256)), 8)
    Mp = _round_up(M, tm)

    # Only the activations are padded per-forward (weights were padded at init).
    xp = jnp.zeros((C, Mp, Kp), jnp.float32).at[:, :M, :K].set(x)

    grid = (Mp // tm, C, Kp // tk)

    cost = pl.CostEstimate(
        flops=2 * C * Mp * Kp * Hp + 2 * C * Mp * Hp * Np,
        transcendentals=0,
        bytes_accessed=4 * (xp.size + w_enc_p.size + b_enc_p.size
                            + w_fc_p.size + b_fc_p.size + Mp * Np),
    )

    out = pl.pallas_call(
        _fused_kernel,
        out_shape=jax.ShapeDtypeStruct((Mp, Np), jnp.float32),
        grid_spec=pltpu.PrefetchScalarGridSpec(
            num_scalar_prefetch=0,
            grid=grid,
            in_specs=[
                # activations: context c, row tile i, K slab k
                pl.BlockSpec((None, tm, tk), lambda i, c, k: (c, i, k)),
                # encoder weight: K slab k (resident across i, c)
                pl.BlockSpec((tk, Hp), lambda i, c, k: (k, 0)),
                # encoder bias: constant block
                pl.BlockSpec((1, Hp), lambda i, c, k: (0, 0)),
                # fc weight rows for context c
                pl.BlockSpec((None, Hp, Np), lambda i, c, k: (c, 0, 0)),
                # fc bias: constant block
                pl.BlockSpec((1, Np), lambda i, c, k: (0, 0)),
            ],
            out_specs=pl.BlockSpec((tm, Np), lambda i, c, k: (i, 0)),
            scratch_shapes=[
                pltpu.VMEM((tm, Hp), jnp.float32),   # encoder accumulator
                pltpu.VMEM((tm, Np), jnp.float32),   # fc (context) accumulator
            ],
        ),
        compiler_params=pltpu.CompilerParams(
            dimension_semantics=("parallel", "arbitrary", "arbitrary"),
            vmem_limit_bytes=32 * 1024 * 1024,
        ),
        cost_estimate=cost,
    )(xp, w_enc_p, b_enc_p, w_fc_p, b_fc_p)

    return out[:M, :num_classes]


class ContextPredictionNetPallas:
    """JAX/Pallas port of ContextPredictionNet's forward pass.

    encoder: flatten -> Linear(in_features, hidden) -> ReLU
             (the layer listed in `ignored_layers` is nn.Identity == no-op)
    fc:      Linear(num_context * hidden, num_classes)
             (LazyLinear analogue, materialized eagerly since the concat
              width is known in-script)
    """

    def __init__(self, num_classes, in_features, hidden, num_context, key):
        k1, k2, k3, k4 = jax.random.split(key, 4)
        enc_scale = 1.0 / float(in_features) ** 0.5
        fc_in = num_context * hidden
        fc_scale = 1.0 / float(fc_in) ** 0.5

        # Raw (unpadded) parameters — used by the pure-JAX reference.
        self.w_enc = jax.random.uniform(
            k1, (in_features, hidden), jnp.float32, -enc_scale, enc_scale)
        self.b_enc = jax.random.uniform(
            k2, (hidden,), jnp.float32, -enc_scale, enc_scale)
        self.w_fc = jax.random.uniform(
            k3, (fc_in, num_classes), jnp.float32, -fc_scale, fc_scale)
        self.b_fc = jax.random.uniform(
            k4, (num_classes,), jnp.float32, -fc_scale, fc_scale)

        self.num_classes = num_classes
        self.in_features = in_features
        self.hidden = hidden
        self.num_context = num_context

        # Lane/sublane-aligned, MXU-ready copies — padded ONCE here, not per
        # forward call.  Zero padding is numerically inert.
        Kp = _round_up(in_features, 128)
        tk = 128
        for cand in (512, 384, 256, 128):
            if Kp >= cand and Kp % cand == 0:
                tk = cand
                break
        Hp = _round_up(hidden, 128)
        Np = _round_up(num_classes, 128)
        self.Kp, self.tk, self.Hp, self.Np = Kp, tk, Hp, Np

        self.w_enc_p = jnp.zeros((Kp, Hp), jnp.float32).at[
            :in_features, :hidden].set(self.w_enc)
        self.b_enc_p = jnp.zeros((1, Hp), jnp.float32).at[
            0, :hidden].set(self.b_enc)
        # fc weight split per context: rows [c*hidden:(c+1)*hidden] of w_fc.
        w_fc3 = self.w_fc.reshape(num_context, hidden, num_classes)
        self.w_fc_p = jnp.zeros((num_context, Hp, Np), jnp.float32).at[
            :, :hidden, :num_classes].set(w_fc3)
        self.b_fc_p = jnp.zeros((1, Np), jnp.float32).at[
            0, :num_classes].set(self.b_fc)

    def __call__(self, inputs):
        n = len(inputs)
        assert n == self.num_context
        B = inputs[0].shape[0]
        # Stack the context views along a leading axis; flattening is metadata.
        x = jnp.stack([inp.reshape(B, -1) for inp in inputs], axis=0)  # (C,B,K)
        return context_prediction_fused(
            x, self.w_enc_p, self.b_enc_p, self.w_fc_p, self.b_fc_p,
            tk=self.tk, num_classes=self.num_classes)


if __name__ == "__main__":
    key = jax.random.PRNGKey(0)
    kparams, kdata = jax.random.split(key)

    batch, channels, spatial = 2, 4, 16
    hidden, num_classes, num_context = 32, 10, 3
    in_features = channels * spatial * spatial  # 1024 -> two K grid steps

    net = ContextPredictionNetPallas(
        num_classes, in_features, hidden, num_context, kparams)

    xkeys = jax.random.split(kdata, num_context)
    inputs = [
        jax.random.normal(k, (batch, channels, spatial, spatial), jnp.float32)
        for k in xkeys
    ]

    logits = jax.block_until_ready(net(inputs))
    assert logits.shape == (batch, num_classes), logits.shape
    assert logits.dtype == jnp.float32

    # Pure-JAX reference of the same forward pass.
    def ref_forward(inps):
        outs = []
        for inp in inps:
            f = inp.reshape(inp.shape[0], -1)
            outs.append(jnp.maximum(f @ net.w_enc + net.b_enc, 0.0))
        cat = jnp.concatenate(outs, axis=-1)
        return cat @ net.w_fc + net.b_fc

    ref = jax.block_until_ready(ref_forward(inputs))
    assert jnp.allclose(logits, ref, rtol=1e-3, atol=1e-3), float(
        jnp.max(jnp.abs(logits - ref)))

    print("KERNEL_OK")
</pallas_src>

<mosaic_0001>
module attributes {stable_mosaic.version = 11 : i64} {
  func.func @_fused_kernel(%arg0: i32, %arg1: i32, %arg2: i32, %arg3: memref<1x8x512xf32, #tpu.memory_space<vmem>>, %arg4: memref<512x128xf32, #tpu.memory_space<vmem>>, %arg5: memref<1x128xf32, #tpu.memory_space<vmem>>, %arg6: memref<1x128x128xf32, #tpu.memory_space<vmem>>, %arg7: memref<1x128xf32, #tpu.memory_space<vmem>>, %arg8: memref<8x128xf32, #tpu.memory_space<vmem>>, %arg9: memref<8x128xf32, #tpu.memory_space<vmem>>, %arg10: memref<8x128xf32, #tpu.memory_space<vmem>>) attributes {dimension_semantics = [#tpu.dimension_semantics<parallel>, #tpu.dimension_semantics<arbitrary>, #tpu.dimension_semantics<arbitrary>], iteration_bounds = array<i64: 1, 3, 2>, scalar_prefetch = 0 : i64, scratch_operands = 2 : i64, tpu.core_type = #tpu.core_type<tc>, window_params = [{transform_indices = @transform_0, window_bounds = array<i64: 1, 8, 512>}, {transform_indices = @transform_1, window_bounds = array<i64: 512, 128>}, {pipeline_mode = #tpu.pipeline_mode<synchronous>, transform_indices = @transform_2, window_bounds = array<i64: 1, 128>}, {transform_indices = @transform_3, window_bounds = array<i64: 1, 128, 128>}, {pipeline_mode = #tpu.pipeline_mode<synchronous>, transform_indices = @transform_4, window_bounds = array<i64: 1, 128>}, {transform_indices = @transform_5, window_bounds = array<i64: 8, 128>}]} {
    %c0_i32 = arith.constant 0 : i32
    %0 = arith.cmpi eq, %arg1, %c0_i32 : i32
    %c0_i32_0 = arith.constant 0 : i32
    %1 = arith.cmpi eq, %arg2, %c0_i32_0 : i32
    %2 = arith.andi %0, %1 : i1
    %3 = arith.extui %2 : i1 to i32
    %c0_i32_1 = arith.constant 0 : i32
    %4 = arith.cmpi ne, %3, %c0_i32_1 : i32
    scf.if %4 {
      %cst_15 = arith.constant 0.000000e+00 : f32
      %23 = vector.broadcast %cst_15 : f32 to vector<8x128xf32>
      %c0_16 = arith.constant 0 : index
      %c0_17 = arith.constant 0 : index
      %24 = vector.load %arg10[%c0_16, %c0_17] : memref<8x128xf32, #tpu.memory_space<vmem>>, vector<8x128xf32>
      tpu.vector_store %arg10[%c0_16, %c0_17], %23 {strides = array<i32>} : memref<8x128xf32, #tpu.memory_space<vmem>>, vector<8x128xf32>,
    } else {
    }
    %c0_i32_2 = arith.constant 0 : i32
    %5 = arith.cmpi eq, %arg2, %c0_i32_2 : i32
    %6 = arith.extui %5 : i1 to i32
    %c0_i32_3 = arith.constant 0 : i32
    %7 = arith.cmpi ne, %6, %c0_i32_3 : i32
    scf.if %7 {
      %cst_15 = arith.constant 0.000000e+00 : f32
      %23 = vector.broadcast %cst_15 : f32 to vector<8x128xf32>
      %c0_16 = arith.constant 0 : index
      %c0_17 = arith.constant 0 : index
      %24 = vector.load %arg9[%c0_16, %c0_17] : memref<8x128xf32, #tpu.memory_space<vmem>>, vector<8x128xf32>
      tpu.vector_store %arg9[%c0_16, %c0_17], %23 {strides = array<i32>} : memref<8x128xf32, #tpu.memory_space<vmem>>, vector<8x128xf32>,
    } else {
    }
    %c0 = arith.constant 0 : index
    %c0_4 = arith.constant 0 : index
    %8 = vector.load %arg9[%c0, %c0_4] : memref<8x128xf32, #tpu.memory_space<vmem>>, vector<8x128xf32>
    %c0_5 = arith.constant 0 : index
    %c0_6 = arith.constant 0 : index
    %c0_7 = arith.constant 0 : index
    %9 = vector.load %arg3[%c0_5, %c0_6, %c0_7] : memref<1x8x512xf32, #tpu.memory_space<vmem>>, vector<1x8x512xf32>
    %10 = vector.shape_cast %9 : vector<1x8x512xf32> to vector<8x512xf32>
    %c0_8 = arith.constant 0 : index
    %c0_9 = arith.constant 0 : index
    %11 = vector.load %arg4[%c0_8, %c0_9] : memref<512x128xf32, #tpu.memory_space<vmem>>, vector<512x128xf32>
    %cst = arith.constant dense<0.000000e+00> : vector<8x128xf32>
    %12 = tpu.matmul %10, %11, %cst {dimension_numbers = #tpu.dot_dimension_numbers<[1], [0], [0], [1], [0, 0, 1, 1], [], []>} : vector<8x512xf32>, vector<512x128xf32>, vector<8x128xf32> -> vector<8x128xf32>
    %13 = arith.addf %8, %12 : vector<8x128xf32>
    %c0_10 = arith.constant 0 : index
    %c0_11 = arith.constant 0 : index
    %14 = vector.load %arg9[%c0_10, %c0_11] : memref<8x128xf32, #tpu.memory_space<vmem>>, vector<8x128xf32>
    tpu.vector_store %arg9[%c0_10, %c0_11], %13 {strides = array<i32>} : memref<8x128xf32, #tpu.memory_space<vmem>>, vector<8x128xf32>,
    %c1_i32 = arith.constant 1 : i32
    %15 = arith.cmpi eq, %arg2, %c1_i32 : i32
    %16 = arith.extui %15 : i1 to i32
    %c0_i32_12 = arith.constant 0 : i32
    %17 = arith.cmpi ne, %16, %c0_i32_12 : i32
    scf.if %17 {
      %c0_15 = arith.constant 0 : index
      %c0_16 = arith.constant 0 : index
      %23 = vector.load %arg9[%c0_15, %c0_16] : memref<8x128xf32, #tpu.memory_space<vmem>>, vector<8x128xf32>
      %c0_17 = arith.constant 0 : index
      %c0_18 = arith.constant 0 : index
      %24 = vector.load %arg5[%c0_17, %c0_18] : memref<1x128xf32, #tpu.memory_space<vmem>>, vector<1x128xf32>
      %25 = vector.broadcast %24 : vector<1x128xf32> to vector<8x128xf32>
      %26 = arith.addf %23, %25 : vector<8x128xf32>
      %cst_19 = arith.constant 0.000000e+00 : f32
      %27 = vector.broadcast %cst_19 : f32 to vector<8x128xf32>
      %28 = arith.maximumf %26, %27 : vector<8x128xf32>
      %c0_20 = arith.constant 0 : index
      %c0_21 = arith.constant 0 : index
      %29 = vector.load %arg10[%c0_20, %c0_21] : memref<8x128xf32, #tpu.memory_space<vmem>>, vector<8x128xf32>
      %c0_22 = arith.constant 0 : index
      %c0_23 = arith.constant 0 : index
      %c0_24 = arith.constant 0 : index
      %30 = vector.load %arg6[%c0_22, %c0_23, %c0_24] : memref<1x128x128xf32, #tpu.memory_space<vmem>>, vector<1x128x128xf32>
      %31 = vector.shape_cast %30 : vector<1x128x128xf32> to vector<128x128xf32>
      %cst_25 = arith.constant dense<0.000000e+00> : vector<8x128xf32>
      %32 = tpu.matmul %28, %31, %cst_25 {dimension_numbers = #tpu.dot_dimension_numbers<[1], [0], [0], [1], [0, 0, 1, 1], [], []>} : vector<8x128xf32>, vector<128x128xf32>, vector<8x128xf32> -> vector<8x128xf32>
      %33 = arith.addf %29, %32 : vector<8x128xf32>
      %c0_26 = arith.constant 0 : index
      %c0_27 = arith.constant 0 : index
      %34 = vector.load %arg10[%c0_26, %c0_27] : memref<8x128xf32, #tpu.memory_space<vmem>>, vector<8x128xf32>
      tpu.vector_store %arg10[%c0_26, %c0_27], %33 {strides = array<i32>} : memref<8x128xf32, #tpu.memory_space<vmem>>, vector<8x128xf32>,
    } else {
    }
    %c2_i32 = arith.constant 2 : i32
    %18 = arith.cmpi eq, %arg1, %c2_i32 : i32
    %c1_i32_13 = arith.constant 1 : i32
    %19 = arith.cmpi eq, %arg2, %c1_i32_13 : i32
    %20 = arith.andi %18, %19 : i1
    %21 = arith.extui %20 : i1 to i32
    %c0_i32_14 = arith.constant 0 : i32
    %22 = arith.cmpi ne, %21, %c0_i32_14 : i32
    scf.if %22 {
      %c0_15 = arith.constant 0 : index
      %c0_16 = arith.constant 0 : index
      %23 = vector.load %arg10[%c0_15, %c0_16] : memref<8x128xf32, #tpu.memory_space<vmem>>, vector<8x128xf32>
      %c0_17 = arith.constant 0 : index
      %c0_18 = arith.constant 0 : index
      %24 = vector.load %arg7[%c0_17, %c0_18] : memref<1x128xf32, #tpu.memory_space<vmem>>, vector<1x128xf32>
      %25 = vector.broadcast %24 : vector<1x128xf32> to vector<8x128xf32>
      %26 = arith.addf %23, %25 : vector<8x128xf32>
      %c0_19 = arith.constant 0 : index
      %c0_20 = arith.constant 0 : index
      %27 = vector.load %arg8[%c0_19, %c0_20] : memref<8x128xf32, #tpu.memory_space<vmem>>, vector<8x128xf32>
      tpu.vector_store %arg8[%c0_19, %c0_20], %26 {strides = array<i32>} : memref<8x128xf32, #tpu.memory_space<vmem>>, vector<8x128xf32>,
    } else {
    }
    return
  }
  func.func @transform_0(%arg0: i32, %arg1: i32, %arg2: i32) -> (i32, i32, i32) {
    %c0_i32 = arith.constant 0 : i32
    return %arg1, %arg0, %arg2 : i32, i32, i32
  }
  func.func @transform_1(%arg0: i32, %arg1: i32, %arg2: i32) -> (i32, i32) {
    %c0_i32 = arith.constant 0 : i32
    %c0_i32_0 = arith.constant 0 : i32
    return %arg2, %c0_i32 : i32, i32
  }
  func.func @transform_2(%arg0: i32, %arg1: i32, %arg2: i32) -> (i32, i32) {
    %c0_i32 = arith.constant 0 : i32
    %c0_i32_0 = arith.constant 0 : i32
    %c0_i32_1 = arith.constant 0 : i32
    return %c0_i32, %c0_i32_0 : i32, i32
  }
  func.func @transform_3(%arg0: i32, %arg1: i32, %arg2: i32) -> (i32, i32, i32) {
    %c0_i32 = arith.constant 0 : i32
    %c0_i32_0 = arith.constant 0 : i32
    %c0_i32_1 = arith.constant 0 : i32
    return %arg1, %c0_i32, %c0_i32_0 : i32, i32, i32
  }
  func.func @transform_4(%arg0: i32, %arg1: i32, %arg2: i32) -> (i32, i32) {
    %c0_i32 = arith.constant 0 : i32
    %c0_i32_0 = arith.constant 0 : i32
    %c0_i32_1 = arith.constant 0 : i32
    return %c0_i32, %c0_i32_0 : i32, i32
  }
  func.func @transform_5(%arg0: i32, %arg1: i32, %arg2: i32) -> (i32, i32) {
    %c0_i32 = arith.constant 0 : i32
    %c0_i32_0 = arith.constant 0 : i32
    return %arg0, %c0_i32 : i32, i32
  }
}

</mosaic_0001>

<llo_original>
// kernel: tpu_custom_call.1
$region0: #{tpu_custom_call.1}
  #allocation0 [shape = 'u32[]', space=smem, size = 0x4, offset = 0x4, fixed_abs, tag = 'smem constant byte address 0x4 - core index']
  #allocation1 [shape = 'u32[144,128]{1,0:T(1,128)}', space=vmem, size = 0x12000, scoped, tag = 'internal scratch']
  #allocation2 [shape = 'f32[8,128]{1,0:T(8,128)}', space=vmem, size = 0x1000, scoped, tag = 'scratch operand']
  #allocation3 [shape = 'f32[8,128]{1,0:T(8,128)}', space=vmem, size = 0x1000, scoped, tag = 'scratch operand']
  %s0 = inlined_call_operand.hbm [shape: f32[3,8,1024], index: 0, kind: input, shape index: {}]
  %s1 = inlined_call_operand.hbm [shape: f32[1024,128], index: 1, kind: input, shape index: {}]
  %s2 = inlined_call_operand.vmem [shape: f32[1,128], index: 2, kind: input, shape index: {}]
  %s3 = inlined_call_operand.hbm [shape: f32[3,128,128], index: 3, kind: input, shape index: {}]
  %s4 = inlined_call_operand.vmem [shape: f32[1,128], index: 4, kind: input, shape index: {}]
  %s5 = inlined_call_operand.hbm [shape: f32[8,128], index: 5, kind: output, shape index: {}]
  %s6 = sld [smem:[#allocation0]]
  $region81: #{tpu_custom_call.1} parent=0
    _
  %s8 = ssub.s32 1, %s6
  %s9 = scalar_select 0, %s8, %s6
  $region1: #{tpu_custom_call.1} parent=0
    #allocation4 [shape = 'u8[32768]{0}', space=vmem, size = 0x8000, scoped, tag = 'input window, operand 0']
    #allocation5 [shape = 's32[2]{0}', space=sflag, size = 0x8, scoped, tag = 'scoped memory for tpu_custom_call.1']
    #allocation6 [shape = 's32[2]{0}', space=sflag, size = 0x8, scoped, tag = 'scoped memory for tpu_custom_call.1']
    #allocation7 [shape = 'u8[524288]{0}', space=vmem, size = 0x80000, scoped, tag = 'input window, operand 1']
    #allocation8 [shape = 's32[2]{0}', space=sflag, size = 0x8, scoped, tag = 'scoped memory for tpu_custom_call.1']
    #allocation9 [shape = 'u8[131072]{0}', space=vmem, size = 0x20000, scoped, tag = 'input window, operand 3']
    #allocation10 [shape = 'u8[4096]{0}', space=vmem, size = 0x1000, scoped, tag = 'output window, operand 0, single buffered']
    %10 = vsyncpa [#allocation5], 0
    %s11 = scalar_lea.sflag [#allocation5], 1
    %12 = vsyncpa %s11, 0
    %13 = vsyncpa [#allocation8], 0
    %s14 = scalar_lea.sflag [#allocation8], 1
    %15 = vsyncpa %s14, 0
    %16 = vsyncpa [#allocation6], 0
    loop: start=0, step=1, limit=8
    $region2: #{tpu_custom_call.1} parent=1 // loop_pre_header
      _
    $region3: #{tpu_custom_call.1} parent=1 // loop_header
      %s18 = sphi 0, %s22
      %p19 = scmp.ge.s32.totalorder %s18, 8
      %s25 = sphi 0, %s44
      %s26 = sphi 0, %s40
      %s27 = sphi 0, %s36
      %s28 = sphi 0, %s25
      %s29 = sphi 0, %s26
      %s30 = sphi 0, %s27
      %s31 = sphi 0, %s28
      %s32 = sphi 0, %s29
      %s33 = sphi 0, %s30
      %s51 = sphi 0, %s53
      %s54 = sphi 0, %s51
      %s55 = sphi 0, %s54
      %s71 = sphi 0, %s55
      %s77 = sphi 0, %s79
      %s80 = sphi 0, %s77
      %s81 = sphi 0, %s80
      %s97 = sphi 0, %s81
      %s101 = sphi 0, %s101
      %s103 = sphi 0, %s101
      %s104 = sphi 0, %s103
      %s118 = sphi 0, %s104
      %s124 = sphi 0, %s126
      %s127 = sphi 0, %s124
      %s128 = sphi 0, %s127
      %s144 = sphi 0, %s128
      %s148 = sphi 0, %s148
      %s150 = sphi 0, %s148
      %s151 = sphi 0, %s150
      %s165 = sphi 0, %s151
      %s171 = sphi 0, %s173
      %s174 = sphi 0, %s171
      %s175 = sphi 0, %s174
      %s191 = sphi 0, %s175
    $region4: #{tpu_custom_call.1} parent=1 // loop_header_branch
      %21 = sbr.rel (%p19) target = $region8
    $region5: #{tpu_custom_call.1} parent=1 // loop_body
      %s23 = ssub.s32 %s18, 1
      %s24 = ssub.s32 %s18, 2
      %s34 = sadd.s32 1, %s27
      %p35 = scmp.ge.s32.totalorder %s34, 2
      %s36 = scalar_select %p35, 0, %s34
      %s37 = sadd.s32 1, %s26
      %s38 = scalar_select %p35, %s37, %s26
      %p39 = scmp.ge.s32.totalorder %s38, 3
      %s40 = scalar_select %p39, 0, %s38
      %s41 = sadd.s32 1, %s25
      %s42 = scalar_select %p39, %s41, %s25
      %p43 = scmp.ge.s32.totalorder %s42, 1
      %s44 = scalar_select %p43, 0, %s42
      %s45 = ssub.s32 %s26, %s40
      %s46 = ssub.s32 %s25, %s44
      %s47 = sor.u32 %s45, %s46
      %s48 = ssub.s32 %s27, %s36
      %s49 = sor.u32 %s47, %s48
      %p50 = scmp.eq.s32.totalorder %s49, 0
      %s52 = sadd.s32 %s51, 1
      %s53 = scalar_select %p50, %s51, %s52
      %p56 = pneg %p50
      %p57 = scmp.eq.s32.totalorder %s18, 5
      %p58 = por %p56, %p57
      %p59 = scmp.ne.s32.totalorder %s51, %s54
      %p60 = scmp.eq.s32.totalorder %s18, 0
      %p61 = por %p59, %p60
      %p62 = scmp.ne.s32.totalorder %s51, %s54
      %p63 = scmp.eq.s32.totalorder %s23, 5
      %p64 = por %p62, %p63
      %p65 = scmp.ne.s32.totalorder %s54, %s55
      %p66 = scmp.eq.s32.totalorder %s23, 0
      %p67 = por %p65, %p66
      %p68 = scmp.ne.s32.totalorder %s54, %s55
      %p69 = scmp.eq.s32.totalorder %s24, 5
      %p70 = por %p68, %p69
      %p72 = scmp.ne.s32.totalorder %s55, %s71
      %p73 = scmp.eq.s32.totalorder %s24, 0
      %p74 = por %p72, %p73
      %s75 = ssub.s32 %s27, %s36
      %p76 = scmp.eq.s32.totalorder %s75, 0
      %s78 = sadd.s32 %s77, 1
      %s79 = scalar_select %p76, %s77, %s78
      %p82 = pneg %p76
      %p83 = scmp.eq.s32.totalorder %s18, 5
      %p84 = por %p82, %p83
      %p85 = scmp.ne.s32.totalorder %s77, %s80
      %p86 = scmp.eq.s32.totalorder %s18, 0
      %p87 = por %p85, %p86
      %p88 = scmp.ne.s32.totalorder %s77, %s80
      %p89 = scmp.eq.s32.totalorder %s23, 5
      %p90 = por %p88, %p89
      %p91 = scmp.ne.s32.totalorder %s80, %s81
      %p92 = scmp.eq.s32.totalorder %s23, 0
      %p93 = por %p91, %p92
      %p94 = scmp.ne.s32.totalorder %s80, %s81
      %p95 = scmp.eq.s32.totalorder %s24, 5
      %p96 = por %p94, %p95
      %p98 = scmp.ne.s32.totalorder %s81, %s97
      %p99 = scmp.eq.s32.totalorder %s24, 0
      %p100 = por %p98, %p99
      %s102 = sadd.s32 %s101, 1
      %p105 = scmp.eq.s32.totalorder %s18, 5
      %p106 = scmp.ne.s32.totalorder %s101, %s103
      %p107 = scmp.eq.s32.totalorder %s18, 0
      %p108 = por %p106, %p107
      %p109 = scmp.ne.s32.totalorder %s101, %s103
      %p110 = scmp.eq.s32.totalorder %s23, 5
      %p111 = por %p109, %p110
      %p112 = scmp.ne.s32.totalorder %s103, %s104
      %p113 = scmp.eq.s32.totalorder %s23, 0
      %p114 = por %p112, %p113
      %p115 = scmp.ne.s32.totalorder %s103, %s104
      %p116 = scmp.eq.s32.totalorder %s24, 5
      %p117 = por %p115, %p116
      %p119 = scmp.ne.s32.totalorder %s104, %s118
      %p120 = scmp.eq.s32.totalorder %s24, 0
      %p121 = por %p119, %p120
      %s122 = ssub.s32 %s26, %s40
      %p123 = scmp.eq.s32.totalorder %s122, 0
      %s125 = sadd.s32 %s124, 1
      %s126 = scalar_select %p123, %s124, %s125
      %p129 = pneg %p123
      %p130 = scmp.eq.s32.totalorder %s18, 5
      %p131 = por %p129, %p130
      %p132 = scmp.ne.s32.totalorder %s124, %s127
      %p133 = scmp.eq.s32.totalorder %s18, 0
      %p134 = por %p132, %p133
      %p135 = scmp.ne.s32.totalorder %s124, %s127
      %p136 = scmp.eq.s32.totalorder %s23, 5
      %p137 = por %p135, %p136
      %p138 = scmp.ne.s32.totalorder %s127, %s128
      %p139 = scmp.eq.s32.totalorder %s23, 0
      %p140 = por %p138, %p139
      %p141 = scmp.ne.s32.totalorder %s127, %s128
      %p142 = scmp.eq.s32.totalorder %s24, 5
      %p143 = por %p141, %p142
      %p145 = scmp.ne.s32.totalorder %s128, %s144
      %p146 = scmp.eq.s32.totalorder %s24, 0
      %p147 = por %p145, %p146
      %s149 = sadd.s32 %s148, 1
      %p152 = scmp.eq.s32.totalorder %s18, 5
      %p153 = scmp.ne.s32.totalorder %s148, %s150
      %p154 = scmp.eq.s32.totalorder %s18, 0
      %p155 = por %p153, %p154
      %p156 = scmp.ne.s32.totalorder %s148, %s150
      %p157 = scmp.eq.s32.totalorder %s23, 5
      %p158 = por %p156, %p157
      %p159 = scmp.ne.s32.totalorder %s150, %s151
      %p160 = scmp.eq.s32.totalorder %s23, 0
      %p161 = por %p159, %p160
      %p162 = scmp.ne.s32.totalorder %s150, %s151
      %p163 = scmp.eq.s32.totalorder %s24, 5
      %p164 = por %p162, %p163
      %p166 = scmp.ne.s32.totalorder %s151, %s165
      %p167 = scmp.eq.s32.totalorder %s24, 0
      %p168 = por %p166, %p167
      %s169 = ssub.s32 %s25, %s44
      %p170 = scmp.eq.s32.totalorder %s169, 0
      %s172 = sadd.s32 %s171, 1
      %s173 = scalar_select %p170, %s171, %s172
      %p176 = pneg %p170
      %p177 = scmp.eq.s32.totalorder %s18, 5
      %p178 = por %p176, %p177
      %p179 = scmp.ne.s32.totalorder %s171, %s174
      %p180 = scmp.eq.s32.totalorder %s18, 0
      %p181 = por %p179, %p180
      %p182 = scmp.ne.s32.totalorder %s171, %s174
      %p183 = scmp.eq.s32.totalorder %s23, 5
      %p184 = por %p182, %p183
      %p185 = scmp.ne.s32.totalorder %s174, %s175
      %p186 = scmp.eq.s32.totalorder %s23, 0
      %p187 = por %p185, %p186
      %p188 = scmp.ne.s32.totalorder %s174, %s175
      %p189 = scmp.eq.s32.totalorder %s24, 5
      %p190 = por %p188, %p189
      %p192 = scmp.ne.s32.totalorder %s175, %s191
      %p193 = scmp.eq.s32.totalorder %s24, 0
      %p194 = por %p192, %p193
      %p195 = scmp.le.s32.totalorder 1, %s18
      %p196 = scmp.lt.s32.totalorder %s18, 7
      %p197 = pnand %p195, %p196
      %p198 = pneg %p197
      // Predicated region
      $region9: #{tpu_custom_call.1} parent=5 // pred_check
        _
      $region10: #{tpu_custom_call.1} parent=5 // pred_check_branch
        %200 = sbr.rel (%p197) target = $region12
      $region11: #{tpu_custom_call.1} parent=5 // pred_region
        %s201 = ssub.s32 %s18, 1
        // Predicated region
        $region13: #{tpu_custom_call.1} parent=11 // pred_check
          %p202 = pneg %p114
        $region14: #{tpu_custom_call.1} parent=11 // pred_check_branch
          %204 = sbr.rel (%p202) target = $region16
        $region15: #{tpu_custom_call.1} parent=11 // pred_region
          _
        $region16: #{tpu_custom_call.1} parent=11 // pred_fallthru
          _
        // Predicated region
        $region17: #{tpu_custom_call.1} parent=11 // pred_check
          %p205 = pneg %p161
        $region18: #{tpu_custom_call.1} parent=11 // pred_check_branch
          %207 = sbr.rel (%p205) target = $region20
        $region19: #{tpu_custom_call.1} parent=11 // pred_region
          _
        $region20: #{tpu_custom_call.1} parent=11 // pred_fallthru
          _
      $region12: #{tpu_custom_call.1} parent=5 // pred_fallthru
        _
      %p208 = scmp.lt.s32.totalorder %s18, 6
      // Predicated region
      $region21: #{tpu_custom_call.1} parent=5 // pred_check
        %p209 = pneg %p208
      $region22: #{tpu_custom_call.1} parent=5 // pred_check_branch
        %211 = sbr.rel (%p209) target = $region24
      $region23: #{tpu_custom_call.1} parent=5 // pred_region
        // Predicated region
        $region25: #{tpu_custom_call.1} parent=23 // pred_check
          %p212 = pneg %p61
        $region26: #{tpu_custom_call.1} parent=23 // pred_check_branch
          %214 = sbr.rel (%p212) target = $region28
        $region27: #{tpu_custom_call.1} parent=23 // pred_region
          %s215 = sand.u32 %s51, 1
          %s216 = scalar_lea.sflag [#allocation5], %s215
          %s217 = sand.u32 %s51, 1
          %s218 = smul.addr %s217, 32
          %s219 = scalar_lea.vmem [#allocation4], %s218
          %s220 = smul.u32 4, %s27
          %s222 = ssub.s32 512, 512
          %223 = vsyncadd %s216, %s222
          %s224 = smul.addr %s25, 8
          %s225 = sadd.s32 %s220, %s224
          %s226 = smul.addr %s26, 8
          %s227 = sadd.s32 %s225, %s226
          %s228 = smul.addr %s227, 128
          %s229 = scalar_lea.hbm %s0, %s228
          %s231 = sshll.u32 %s219, 4
          %s232 = int_to_ptr.vmem [resolvable:$true] %s231
          %234 = dma.hbm_to_vmem [thread:$0]  %s229, 512, %s232, %s216
        $region28: #{tpu_custom_call.1} parent=23 // pred_fallthru
          _
        // Predicated region
        $region29: #{tpu_custom_call.1} parent=23 // pred_check
          %p235 = pneg %p87
        $region30: #{tpu_custom_call.1} parent=23 // pred_check_branch
          %237 = sbr.rel (%p235) target = $region32
        $region31: #{tpu_custom_call.1} parent=23 // pred_region
          %s238 = sand.u32 %s18, 1
          %s239 = scalar_lea.sflag [#allocation8], %s238
          %s240 = sand.u32 %s77, 1
          %s241 = smul.addr %s240, 512
          %s242 = scalar_lea.vmem [#allocation7], %s241
          %s243 = smul.u32 64, %s27
          %s245 = ssub.s32 8192, 8192
          %246 = vsyncadd %s239, %s245
          %s247 = smul.addr %s243, 128
          %s248 = scalar_lea.hbm %s1, %s247
          %s249 = sshll.u32 %s242, 4
          %s250 = int_to_ptr.vmem [resolvable:$true] %s249
          %255 = dma.hbm_to_vmem [thread:$0]  %s248, 8192, %s250, %s239, 128, 128, 8
        $region32: #{tpu_custom_call.1} parent=23 // pred_fallthru
          _
        // Predicated region
        $region33: #{tpu_custom_call.1} parent=23 // pred_check
          %p256 = pneg %p134
        $region34: #{tpu_custom_call.1} parent=23 // pred_check_branch
          %258 = sbr.rel (%p256) target = $region36
        $region35: #{tpu_custom_call.1} parent=23 // pred_region
          %s259 = sand.u32 %s18, 1
          %s260 = scalar_lea.sflag [#allocation8], %s259
          %s261 = sand.u32 %s124, 1
          %s262 = smul.addr %s261, 128
          %s263 = scalar_lea.vmem [#allocation9], %s262
          %s265 = ssub.s32 2048, 2048
          %266 = vsyncadd %s260, %s265
          %s267 = smul.addr %s26, 16
          %s268 = smul.addr %s267, 128
          %s269 = scalar_lea.hbm %s3, %s268
          %s270 = sshll.u32 %s263, 4
          %s271 = int_to_ptr.vmem [resolvable:$true] %s270
          %276 = dma.hbm_to_vmem [thread:$0]  %s269, 2048, %s271, %s260, 128, 128, 8
        $region36: #{tpu_custom_call.1} parent=23 // pred_fallthru
          _
      $region24: #{tpu_custom_call.1} parent=5 // pred_fallthru
        _
      %p277 = scmp.le.s32.totalorder 1, %s18
      %p278 = scmp.lt.s32.totalorder %s18, 7
      %p279 = pnand %p277, %p278
      %p280 = pneg %p279
      // Predicated region
      $region37: #{tpu_custom_call.1} parent=5 // pred_check
        _
      $region38: #{tpu_custom_call.1} parent=5 // pred_check_branch
        %282 = sbr.rel (%p279) target = $region40
      $region39: #{tpu_custom_call.1} parent=5 // pred_region
        %s283 = ssub.s32 %s18, 1
        %s284 = sand.u32 %s54, 1
        %s285 = scalar_lea.sflag [#allocation5], %s284
        %s286 = sand.u32 %s54, 1
        %s287 = smul.addr %s286, 32
        %s288 = scalar_lea.vmem [#allocation4], %s287
        // Predicated region
        $region41: #{tpu_custom_call.1} parent=39 // pred_check
          %p289 = pneg %p67
        $region42: #{tpu_custom_call.1} parent=39 // pred_check_branch
          %291 = sbr.rel (%p289) target = $region44
        $region43: #{tpu_custom_call.1} parent=39 // pred_region
          %292 = dma.done %s285, 512
        $region44: #{tpu_custom_call.1} parent=39 // pred_fallthru
          _
        %s293 = sand.u32 %s23, 1
        %s294 = scalar_lea.sflag [#allocation8], %s293
        %s295 = sand.u32 %s80, 1
        %s296 = smul.addr %s295, 512
        %s297 = scalar_lea.vmem [#allocation7], %s296
        // Predicated region
        $region45: #{tpu_custom_call.1} parent=39 // pred_check
          %p298 = pneg %p93
        $region46: #{tpu_custom_call.1} parent=39 // pred_check_branch
          %300 = sbr.rel (%p298) target = $region48
        $region47: #{tpu_custom_call.1} parent=39 // pred_region
          %301 = dma.done %s294, 8192
        $region48: #{tpu_custom_call.1} parent=39 // pred_fallthru
          _
        %s302 = sand.u32 %s23, 1
        %s303 = scalar_lea.sflag [#allocation8], %s302
        %s304 = sand.u32 %s127, 1
        %s305 = smul.addr %s304, 128
        %s306 = scalar_lea.vmem [#allocation9], %s305
        // Predicated region
        $region49: #{tpu_custom_call.1} parent=39 // pred_check
          %p307 = pneg %p140
        $region50: #{tpu_custom_call.1} parent=39 // pred_check_branch
          %309 = sbr.rel (%p307) target = $region52
        $region51: #{tpu_custom_call.1} parent=39 // pred_region
          %310 = dma.done %s303, 2048
        $region52: #{tpu_custom_call.1} parent=39 // pred_fallthru
          _
        %s311 = sand.u32 %s54, 1
        %s312 = scalar_lea.sflag [#allocation5], %s311
        %s313 = sand.u32 %s54, 1
        %s314 = smul.addr %s313, 32
        %s315 = scalar_lea.vmem [#allocation4], %s314
        %p316 = pneg %p67
        %p317 = pneg %p64
        %s318 = sand.u32 %s23, 1
        %s319 = scalar_lea.sflag [#allocation8], %s318
        %s320 = sand.u32 %s80, 1
        %s321 = smul.addr %s320, 512
        %s322 = scalar_lea.vmem [#allocation7], %s321
        %p323 = pneg %p93
        %p324 = pneg %p90
        %p325 = pneg %p114
        %p326 = pneg %p111
        %s327 = sand.u32 %s23, 1
        %s328 = scalar_lea.sflag [#allocation8], %s327
        %s329 = sand.u32 %s127, 1
        %s330 = smul.addr %s329, 128
        %s331 = scalar_lea.vmem [#allocation9], %s330
        %p332 = pneg %p140
        %p333 = pneg %p137
        %p334 = pneg %p161
        %p335 = pneg %p158
        %p336 = pneg %p187
        %p337 = pneg %p184
        %s338 = smul.u32 4, %s30
        %s339 = smul.u32 64, %s30
        %p340 = scmp.eq.s32.totalorder %s29, 0
        %p341 = scmp.eq.s32.totalorder %s30, 0
        %p342 = pnand %p340, %p341
        %p343 = pneg %p342
        // Predicated region
        $region53: #{tpu_custom_call.1} parent=39 // pred_check
          _
        $region54: #{tpu_custom_call.1} parent=39 // pred_check_branch
          %345 = sbr.rel (%p342) target = $region56
        $region55: #{tpu_custom_call.1} parent=39 // pred_region
          %346 = vst [vmem:[#allocation3] sm:$0xff] 0.0
        $region56: #{tpu_custom_call.1} parent=39 // pred_fallthru
          _
        // Predicated region
        $region57: #{tpu_custom_call.1} parent=39 // pred_check
          %p347 = pneg %p341
        $region58: #{tpu_custom_call.1} parent=39 // pred_check_branch
          %349 = sbr.rel (%p347) target = $region60
        $region59: #{tpu_custom_call.1} parent=39 // pred_region
          %350 = vst [vmem:[#allocation2] sm:$0xff] 0.0
        $region60: #{tpu_custom_call.1} parent=39 // pred_fallthru
          _
        %v351 = vld [vmem:[#allocation2] sm:$0xff]
        %v352 = vld [vmem:[%s288] sm:$0xff]
        %v353 = vld [vmem:[%s288 + $0x8] sm:$0xff]
        %v354 = vld [vmem:[%s288 + $0x10] sm:$0xff]
        %v355 = vld [vmem:[%s288 + $0x18] sm:$0xff]
        %v356 = vld [vmem:[%s297] sm:$0xff]
        %v357 = vld [vmem:[%s297 + $0x8] sm:$0xff]
        %v358 = vld [vmem:[%s297 + $0x10] sm:$0xff]
        %v359 = vld [vmem:[%s297 + $0x18] sm:$0xff]
        %v360 = vld [vmem:[%s297 + $0x20] sm:$0xff]
        %v361 = vld [vmem:[%s297 + $0x28] sm:$0xff]
        %v362 = vld [vmem:[%s297 + $0x30] sm:$0xff]
        %v363 = vld [vmem:[%s297 + $0x38] sm:$0xff]
        %v364 = vld [vmem:[%s297 + $0x40] sm:$0xff]
        %v365 = vld [vmem:[%s297 + $0x48] sm:$0xff]
        %v366 = vld [vmem:[%s297 + $0x50] sm:$0xff]
        %v367 = vld [vmem:[%s297 + $0x58] sm:$0xff]
        %v368 = vld [vmem:[%s297 + $0x60] sm:$0xff]
        %v369 = vld [vmem:[%s297 + $0x68] sm:$0xff]
        %v370 = vld [vmem:[%s297 + $0x70] sm:$0xff]
        %v371 = vld [vmem:[%s297 + $0x78] sm:$0xff]
        %v372 = vld [vmem:[%s297 + $0x80] sm:$0xff]
        %v373 = vld [vmem:[%s297 + $0x88] sm:$0xff]
        %v374 = vld [vmem:[%s297 + $0x90] sm:$0xff]
        %v375 = vld [vmem:[%s297 + $0x98] sm:$0xff]
        %v376 = vld [vmem:[%s297 + $0xa0] sm:$0xff]
        %v377 = vld [vmem:[%s297 + $0xa8] sm:$0xff]
        %v378 = vld [vmem:[%s297 + $0xb0] sm:$0xff]
        %v379 = vld [vmem:[%s297 + $0xb8] sm:$0xff]
        %v380 = vld [vmem:[%s297 + $0xc0] sm:$0xff]
        %v381 = vld [vmem:[%s297 + $0xc8] sm:$0xff]
        %v382 = vld [vmem:[%s297 + $0xd0] sm:$0xff]
        %v383 = vld [vmem:[%s297 + $0xd8] sm:$0xff]
        %v384 = vld [vmem:[%s297 + $0xe0] sm:$0xff]
        %v385 = vld [vmem:[%s297 + $0xe8] sm:$0xff]
        %v386 = vld [vmem:[%s297 + $0xf0] sm:$0xff]
        %v387 = vld [vmem:[%s297 + $0xf8] sm:$0xff]
        %v388 = vld [vmem:[%s297 + $0x100] sm:$0xff]
        %v389 = vld [vmem:[%s297 + $0x108] sm:$0xff]
        %v390 = vld [vmem:[%s297 + $0x110] sm:$0xff]
        %v391 = vld [vmem:[%s297 + $0x118] sm:$0xff]
        %v392 = vld [vmem:[%s297 + $0x120] sm:$0xff]
        %v393 = vld [vmem:[%s297 + $0x128] sm:$0xff]
        %v394 = vld [vmem:[%s297 + $0x130] sm:$0xff]
        %v395 = vld [vmem:[%s297 + $0x138] sm:$0xff]
        %v396 = vld [vmem:[%s297 + $0x140] sm:$0xff]
        %v397 = vld [vmem:[%s297 + $0x148] sm:$0xff]
        %v398 = vld [vmem:[%s297 + $0x150] sm:$0xff]
        %v399 = vld [vmem:[%s297 + $0x158] sm:$0xff]
        %v400 = vld [vmem:[%s297 + $0x160] sm:$0xff]
        %v401 = vld [vmem:[%s297 + $0x168] sm:$0xff]
        %v402 = vld [vmem:[%s297 + $0x170] sm:$0xff]
        %v403 = vld [vmem:[%s297 + $0x178] sm:$0xff]
        %v404 = vld [vmem:[%s297 + $0x180] sm:$0xff]
        %v405 = vld [vmem:[%s297 + $0x188] sm:$0xff]
        %v406 = vld [vmem:[%s297 + $0x190] sm:$0xff]
        %v407 = vld [vmem:[%s297 + $0x198] sm:$0xff]
        %v408 = vld [vmem:[%s297 + $0x1a0] sm:$0xff]
        %v409 = vld [vmem:[%s297 + $0x1a8] sm:$0xff]
        %v410 = vld [vmem:[%s297 + $0x1b0] sm:$0xff]
        %v411 = vld [vmem:[%s297 + $0x1b8] sm:$0xff]
        %v412 = vld [vmem:[%s297 + $0x1c0] sm:$0xff]
        %v413 = vld [vmem:[%s297 + $0x1c8] sm:$0xff]
        %v414 = vld [vmem:[%s297 + $0x1d0] sm:$0xff]
        %v415 = vld [vmem:[%s297 + $0x1d8] sm:$0xff]
        %v416 = vld [vmem:[%s297 + $0x1e0] sm:$0xff]
        %v417 = vld [vmem:[%s297 + $0x1e8] sm:$0xff]
        %v418 = vld [vmem:[%s297 + $0x1f0] sm:$0xff]
        %v419 = vld [vmem:[%s297 + $0x1f8] sm:$0xff]
        %420 = vmatprep.subr.mxu0 0.0
        %421 = vmatpush1.msra.mxu0 %v371
        %422 = vmatprep.subr.mxu0 0.0
        %423 = vmatpush1.msra.mxu0 %v370
        %424 = vmatprep.subr.mxu0 0.0
        %425 = vmatpush1.msra.mxu0 %v369
        %426 = vmatprep.subr.mxu0 0.0
        %427 = vmatpush1.msra.mxu0 %v368
        %428 = vmatprep.subr.mxu0 0.0
        %429 = vmatpush1.msra.mxu0 %v367
        %430 = vmatprep.subr.mxu0 0.0
        %431 = vmatpush1.msra.mxu0 %v366
        %432 = vmatprep.subr.mxu0 0.0
        %433 = vmatpush1.msra.mxu0 %v365
        %434 = vmatprep.subr.mxu0 0.0
        %435 = vmatpush1.msra.mxu0 %v364
        %436 = vmatprep.subr.mxu0 0.0
        %437 = vmatpush1.msra.mxu0 %v363
        %438 = vmatprep.subr.mxu0 0.0
        %439 = vmatpush1.msra.mxu0 %v362
        %440 = vmatprep.subr.mxu0 0.0
        %441 = vmatpush1.msra.mxu0 %v361
        %442 = vmatprep.subr.mxu0 0.0
        %443 = vmatpush1.msra.mxu0 %v360
        %444 = vmatprep.subr.mxu0 0.0
        %445 = vmatpush1.msra.mxu0 %v359
        %446 = vmatprep.subr.mxu0 0.0
        %447 = vmatpush1.msra.mxu0 %v358
        %448 = vmatprep.subr.mxu0 0.0
        %449 = vmatpush1.msra.mxu0 %v357
        %450 = vmatprep.subr.mxu0 0.0
        %451 = vmatpush1.msra.mxu0 %v356
        %452 = vmatprep.subr.mxu0 0.0
        %453 = vmatpush2.msra.mxu0 %v387
        %454 = vmatprep.subr.mxu0 0.0
        %455 = vmatpush2.msra.mxu0 %v386
        %456 = vmatprep.subr.mxu0 0.0
        %457 = vmatpush2.msra.mxu0 %v385
        %458 = vmatprep.subr.mxu0 0.0
        %459 = vmatpush2.msra.mxu0 %v384
        %460 = vmatprep.subr.mxu0 0.0
        %461 = vmatpush2.msra.mxu0 %v383
        %462 = vmatprep.subr.mxu0 0.0
        %463 = vmatpush2.msra.mxu0 %v382
        %464 = vmatprep.subr.mxu0 0.0
        %465 = vmatpush2.msra.mxu0 %v381
        %466 = vmatprep.subr.mxu0 0.0
        %467 = vmatpush2.msra.mxu0 %v380
        %468 = vmatprep.subr.mxu0 0.0
        %469 = vmatpush2.msra.mxu0 %v379
        %470 = vmatprep.subr.mxu0 0.0
        %471 = vmatpush2.msra.mxu0 %v378
        %472 = vmatprep.subr.mxu0 0.0
        %473 = vmatpush2.msra.mxu0 %v377
        %474 = vmatprep.subr.mxu0 0.0
        %475 = vmatpush2.msra.mxu0 %v376
        %476 = vmatprep.subr.mxu0 0.0
        %477 = vmatpush2.msra.mxu0 %v375
        %478 = vmatprep.subr.mxu0 0.0
        %479 = vmatpush2.msra.mxu0 %v374
        %480 = vmatprep.subr.mxu0 0.0
        %481 = vmatpush2.msra.mxu0 %v373
        %482 = vmatprep.subr.mxu0 0.0
        %483 = vmatpush2.msra.mxu0 %v372
        %484 = vmatprep.mubr.f32.mxu0 %v353
        %485 = vmatmul.mubr.f32.gmra.mxu0 %v352
        %v486 = vpop.f32.mrf.mxu0
        %v487 = vadd.f32 0.0, %v486
        %v488 = vpop.f32.mrf.mxu0
        %489 = vdwg.mxu0
        %490 = vmatprep.subr.mxu0 0.0
        %491 = vmatpush1.msra.mxu0 %v403
        %492 = vmatprep.subr.mxu0 0.0
        %493 = vmatpush1.msra.mxu0 %v402
        %494 = vmatprep.subr.mxu0 0.0
        %495 = vmatpush1.msra.mxu0 %v401
        %496 = vmatprep.subr.mxu0 0.0
        %497 = vmatpush1.msra.mxu0 %v400
        %498 = vmatprep.subr.mxu0 0.0
        %499 = vmatpush1.msra.mxu0 %v399
        %500 = vmatprep.subr.mxu0 0.0
        %501 = vmatpush1.msra.mxu0 %v398
        %502 = vmatprep.subr.mxu0 0.0
        %503 = vmatpush1.msra.mxu0 %v397
        %504 = vmatprep.subr.mxu0 0.0
        %505 = vmatpush1.msra.mxu0 %v396
        %506 = vmatprep.subr.mxu0 0.0
        %507 = vmatpush1.msra.mxu0 %v395
        %508 = vmatprep.subr.mxu0 0.0
        %509 = vmatpush1.msra.mxu0 %v394
        %510 = vmatprep.subr.mxu0 0.0
        %511 = vmatpush1.msra.mxu0 %v393
        %512 = vmatprep.subr.mxu0 0.0
        %513 = vmatpush1.msra.mxu0 %v392
        %514 = vmatprep.subr.mxu0 0.0
        %515 = vmatpush1.msra.mxu0 %v391
        %516 = vmatprep.subr.mxu0 0.0
        %517 = vmatpush1.msra.mxu0 %v390
        %518 = vmatprep.subr.mxu0 0.0
        %519 = vmatpush1.msra.mxu0 %v389
        %520 = vmatprep.subr.mxu0 0.0
        %521 = vmatpush1.msra.mxu0 %v388
        %522 = vmatprep.subr.mxu0 0.0
        %523 = vmatpush2.msra.mxu0 %v419
        %524 = vmatprep.subr.mxu0 0.0
        %525 = vmatpush2.msra.mxu0 %v418
        %526 = vmatprep.subr.mxu0 0.0
        %527 = vmatpush2.msra.mxu0 %v417
        %528 = vmatprep.subr.mxu0 0.0
        %529 = vmatpush2.msra.mxu0 %v416
        %530 = vmatprep.subr.mxu0 0.0
        %531 = vmatpush2.msra.mxu0 %v415
        %532 = vmatprep.subr.mxu0 0.0
        %533 = vmatpush2.msra.mxu0 %v414
        %534 = vmatprep.subr.mxu0 0.0
        %535 = vmatpush2.msra.mxu0 %v413
        %536 = vmatprep.subr.mxu0 0.0
        %537 = vmatpush2.msra.mxu0 %v412
        %538 = vmatprep.subr.mxu0 0.0
        %539 = vmatpush2.msra.mxu0 %v411
        %540 = vmatprep.subr.mxu0 0.0
        %541 = vmatpush2.msra.mxu0 %v410
        %542 = vmatprep.subr.mxu0 0.0
        %543 = vmatpush2.msra.mxu0 %v409
        %544 = vmatprep.subr.mxu0 0.0
        %545 = vmatpush2.msra.mxu0 %v408
        %546 = vmatprep.subr.mxu0 0.0
        %547 = vmatpush2.msra.mxu0 %v407
        %548 = vmatprep.subr.mxu0 0.0
        %549 = vmatpush2.msra.mxu0 %v406
        %550 = vmatprep.subr.mxu0 0.0
        %551 = vmatpush2.msra.mxu0 %v405
        %552 = vmatprep.subr.mxu0 0.0
        %553 = vmatpush2.msra.mxu0 %v404
        %554 = vmatprep.mubr.f32.mxu0 %v355
        %555 = vmatmul.mubr.f32.gmra.mxu0 %v354
        %v556 = vpop.f32.mrf.mxu0
        %v557 = vadd.f32 %v487, %v556
        %v558 = vpop.f32.mrf.mxu0
        %559 = vdwg.mxu0
        %v560 = vadd.f32 %v351, %v557
        %561 = vst [vmem:[#allocation2] sm:$0xff] %v560
        %p562 = scmp.eq.s32.totalorder %s30, 1
        // Predicated region
        $region61: #{tpu_custom_call.1} parent=39 // pred_check
          %p563 = pneg %p562
        $region62: #{tpu_custom_call.1} parent=39 // pred_check_branch
          %565 = sbr.rel (%p563) target = $region64
        $region63: #{tpu_custom_call.1} parent=39 // pred_region
          %v566 = vld [vmem:[#allocation2] sm:$0xff]
          %v567 = vld [vmem:[%s2] sm:$0x1]
          %v569 = vlaneseq
          %v570 = vshrl.u32 %v569, 7
          %v571 = vsub.s32 0, %v570
          %v572 = vrot.slane %v567, %v571
          %v574 = vadd.f32 %v566, %v572
          %v575 = vmax.f32 %v574, 0.0
          %v576 = vld [vmem:[#allocation3] sm:$0xff]
          %v577 = vld [vmem:[%s306] sm:$0xff]
          %v578 = vld [vmem:[%s306 + $0x8] sm:$0xff]
          %v579 = vld [vmem:[%s306 + $0x10] sm:$0xff]
          %v580 = vld [vmem:[%s306 + $0x18] sm:$0xff]
          %v581 = vld [vmem:[%s306 + $0x20] sm:$0xff]
          %v582 = vld [vmem:[%s306 + $0x28] sm:$0xff]
          %v583 = vld [vmem:[%s306 + $0x30] sm:$0xff]
          %v584 = vld [vmem:[%s306 + $0x38] sm:$0xff]
          %v585 = vld [vmem:[%s306 + $0x40] sm:$0xff]
          %v586 = vld [vmem:[%s306 + $0x48] sm:$0xff]
          %v587 = vld [vmem:[%s306 + $0x50] sm:$0xff]
          %v588 = vld [vmem:[%s306 + $0x58] sm:$0xff]
          %v589 = vld [vmem:[%s306 + $0x60] sm:$0xff]
          %v590 = vld [vmem:[%s306 + $0x68] sm:$0xff]
          %v591 = vld [vmem:[%s306 + $0x70] sm:$0xff]
          %v592 = vld [vmem:[%s306 + $0x78] sm:$0xff]
          %593 = vmatprep.subr.mxu0 0.0
          %594 = vmatpush1.msra.mxu0 %v592
          %595 = vmatprep.subr.mxu0 0.0
          %596 = vmatpush1.msra.mxu0 %v591
          %597 = vmatprep.subr.mxu0 0.0
          %598 = vmatpush1.msra.mxu0 %v590
          %599 = vmatprep.subr.mxu0 0.0
          %600 = vmatpush1.msra.mxu0 %v589
          %601 = vmatprep.subr.mxu0 0.0
          %602 = vmatpush1.msra.mxu0 %v588
          %603 = vmatprep.subr.mxu0 0.0
          %604 = vmatpush1.msra.mxu0 %v587
          %605 = vmatprep.subr.mxu0 0.0
          %606 = vmatpush1.msra.mxu0 %v586
          %607 = vmatprep.subr.mxu0 0.0
          %608 = vmatpush1.msra.mxu0 %v585
          %609 = vmatprep.subr.mxu0 0.0
          %610 = vmatpush1.msra.mxu0 %v584
          %611 = vmatprep.subr.mxu0 0.0
          %612 = vmatpush1.msra.mxu0 %v583
          %613 = vmatprep.subr.mxu0 0.0
          %614 = vmatpush1.msra.mxu0 %v582
          %615 = vmatprep.subr.mxu0 0.0
          %616 = vmatpush1.msra.mxu0 %v581
          %617 = vmatprep.subr.mxu0 0.0
          %618 = vmatpush1.msra.mxu0 %v580
          %619 = vmatprep.subr.mxu0 0.0
          %620 = vmatpush1.msra.mxu0 %v579
          %621 = vmatprep.subr.mxu0 0.0
          %622 = vmatpush1.msra.mxu0 %v578
          %623 = vmatprep.subr.mxu0 0.0
          %624 = vmatpush1.msra.mxu0 %v577
          %625 = vmatprep.subr.mxu0 0.0
          %626 = vmatpush2.msra.mxu0 0.0
          %627 = vmatprep.subr.mxu0 0.0
          %628 = vmatpush2.msra.mxu0 0.0
          %629 = vmatprep.subr.mxu0 0.0
          %630 = vmatpush2.msra.mxu0 0.0
          %631 = vmatprep.subr.mxu0 0.0
          %632 = vmatpush2.msra.mxu0 0.0
          %633 = vmatprep.subr.mxu0 0.0
          %634 = vmatpush2.msra.mxu0 0.0
          %635 = vmatprep.subr.mxu0 0.0
          %636 = vmatpush2.msra.mxu0 0.0
          %637 = vmatprep.subr.mxu0 0.0
          %638 = vmatpush2.msra.mxu0 0.0
          %639 = vmatprep.subr.mxu0 0.0
          %640 = vmatpush2.msra.mxu0 0.0
          %641 = vmatprep.subr.mxu0 0.0
          %642 = vmatpush2.msra.mxu0 0.0
          %643 = vmatprep.subr.mxu0 0.0
          %644 = vmatpush2.msra.mxu0 0.0
          %645 = vmatprep.subr.mxu0 0.0
          %646 = vmatpush2.msra.mxu0 0.0
          %647 = vmatprep.subr.mxu0 0.0
          %648 = vmatpush2.msra.mxu0 0.0
          %649 = vmatprep.subr.mxu0 0.0
          %650 = vmatpush2.msra.mxu0 0.0
          %651 = vmatprep.subr.mxu0 0.0
          %652 = vmatpush2.msra.mxu0 0.0
          %653 = vmatprep.subr.mxu0 0.0
          %654 = vmatpush2.msra.mxu0 0.0
          %655 = vmatprep.subr.mxu0 0.0
          %656 = vmatpush2.msra.mxu0 0.0
          %657 = vmatprep.mubr.f32.mxu0 0.0
          %658 = vmatmul.mubr.f32.gmra.mxu0 %v575
          %v659 = vpop.f32.mrf.mxu0
          %v660 = vadd.f32 0.0, %v659
          %v661 = vpop.f32.mrf.mxu0
          %662 = vdwg.mxu0
          %v663 = vadd.f32 %v576, %v660
          %664 = vst [vmem:[#allocation3] sm:$0xff] %v663
        $region64: #{tpu_custom_call.1} parent=39 // pred_fallthru
          _
        %p665 = scmp.eq.s32.totalorder %s29, 2
        %p666 = pnand %p665, %p562
        %p667 = pneg %p666
        // Predicated region
        $region65: #{tpu_custom_call.1} parent=39 // pred_check
          _
        $region66: #{tpu_custom_call.1} parent=39 // pred_check_branch
          %669 = sbr.rel (%p666) target = $region68
        $region67: #{tpu_custom_call.1} parent=39 // pred_region
          %v670 = vld [vmem:[#allocation3] sm:$0xff]
          %v671 = vld [vmem:[%s4] sm:$0x1]
          %v673 = vlaneseq
          %v674 = vshrl.u32 %v673, 7
          %v675 = vsub.s32 0, %v674
          %v676 = vrot.slane %v671, %v675
          %v678 = vadd.f32 %v670, %v676
          %679 = vst [vmem:[#allocation10] sm:$0xff] %v678
        $region68: #{tpu_custom_call.1} parent=39 // pred_fallthru
          _
        // Predicated region
        $region69: #{tpu_custom_call.1} parent=39 // pred_check
          %p680 = pneg %p184
        $region70: #{tpu_custom_call.1} parent=39 // pred_check_branch
          %682 = sbr.rel (%p680) target = $region72
        $region71: #{tpu_custom_call.1} parent=39 // pred_region
          %s684 = ssub.s32 128, 128
          %685 = vsyncadd [#allocation6], %s684
          %s686 = smul.addr %s28, 128
          %s687 = scalar_lea.hbm %s5, %s686
          %s689 = sshll.u32 [#allocation10], 4
          %s690 = int_to_ptr.vmem [resolvable:$true] %s689
          %692 = dma.vmem_to_hbm [thread:$0]  %s690, 128, %s687, [#allocation6]
        $region72: #{tpu_custom_call.1} parent=39 // pred_fallthru
          _
        // Predicated region
        $region73: #{tpu_custom_call.1} parent=39 // pred_check
          %p693 = pneg %p184
        $region74: #{tpu_custom_call.1} parent=39 // pred_check_branch
          %695 = sbr.rel (%p693) target = $region76
        $region75: #{tpu_custom_call.1} parent=39 // pred_region
          %696 = dma.done [#allocation6], 128
        $region76: #{tpu_custom_call.1} parent=39 // pred_fallthru
          _
      $region40: #{tpu_custom_call.1} parent=5 // pred_fallthru
        _
      %p697 = scmp.le.s32.totalorder 2, %s18
      // Predicated region
      $region77: #{tpu_custom_call.1} parent=5 // pred_check
        %p698 = pneg %p697
      $region78: #{tpu_custom_call.1} parent=5 // pred_check_branch
        %700 = sbr.rel (%p698) target = $region80
      $region79: #{tpu_custom_call.1} parent=5 // pred_region
        %s701 = ssub.s32 %s18, 2
      $region80: #{tpu_custom_call.1} parent=5 // pred_fallthru
        _
    $region6: #{tpu_custom_call.1} parent=1 // loop_footer
      %s22 = sadd.s32 1, %s18
    $region7: #{tpu_custom_call.1} parent=1 // loop_footer_branch
      %17 = sbr.rel target = $region3
    $region8: #{tpu_custom_call.1} parent=1 // loop_exit
      _
    %702 = vsyncpa [#allocation5], 1
    %s703 = scalar_lea.sflag [#allocation5], 1
    %704 = vsyncpa %s703, 1
    %705 = vsyncpa [#allocation8], 1
    %s706 = scalar_lea.sflag [#allocation8], 1
    %707 = vsyncpa %s706, 1
    %708 = vsyncpa [#allocation6], 1
    %s709 = scalar_lea.sflag [#allocation6], 1
    %710 = vsyncpa %s709, 1

</llo_original>
